<compile_context>
chip_gen: v7x
topology: tpu7x:2x2x1
jax: 0.10.0
libtpu: 0.0.40
codegen_flags: <defaults>
</compile_context>

<pallas_src>
import numpy as np
import jax
import jax.numpy as jnp
from jax import lax
from jax.experimental import pallas as pl
from jax.experimental.pallas import tpu as pltpu

# ------------------------- configs (mirrors the PyTorch `configs` object) -------------------
B = 2           # batch
T = 8           # configs.seq_len
D = 32          # configs.d_model
N = 4           # configs.enc_in  (= c_out = number of graph nodes)
CC = 8          # configs.conv_channel
SK = 8          # configs.skip_channel
G = 2           # configs.gcn_depth
ALPHA = 0.3     # configs.propalpha
NODE_DIM = 10   # configs.node_dim
K = D - N + 1   # start_conv kernel height (d_model - enc_in + 1)
EPS = 1e-5      # nn.LayerNorm default eps
SQRT1_2 = 0.7071067811865476
BT = B * T

assert SK * N == D, "packed-parameter layout assumes skip*enc_in == d_model columns"

# shift amounts for the in-kernel block mask (BT and N are powers of two)
ROW_SHIFT = BT.bit_length() - 1     # 16 -> 4
COL_SHIFT = N.bit_length() - 1      # 4  -> 2
assert (1 << ROW_SHIFT) == BT and (1 << COL_SHIFT) == N

# ---------------- packed-parameter row layout (single (PROWS, D) f32 operand) ---------------
R_WFRONT = 0                    # (D, SK*N)   = (32, 32)   8-aligned
R_SELWLIN = R_WFRONT + D        # (SK*N, D)   = (32, 32)   8-aligned
R_W0 = R_SELWLIN + SK * N       # (D, D)      = (32, 32)   8-aligned
R_LBIAS = R_W0 + D              # (B*T, D)    = (16, 32)   8-aligned
R_BFRONT = R_LBIAS + BT         # (1, 32) row vectors follow
R_B0 = R_BFRONT + 1
R_G1 = R_B0 + 1
R_B1 = R_G1 + 1
R_G2 = R_B1 + 1
R_B2 = R_G2 + 1
PROWS = ((R_B2 + 1 + 7) // 8) * 8   # pad total rows to a sublane multiple (118 -> 120)


# ------------------------------------ in-kernel math helpers --------------------------------
def _erf(x):
    # Abramowitz & Stegun 7.1.26 polynomial (max abs err ~1.5e-7); the divide is offloaded to
    # the EUP via pl.reciprocal(approx=True) so the VALU only sees the polynomial FMAs.
    a1, a2, a3, a4, a5 = 0.254829592, -0.284496736, 1.421413741, -1.453152027, 1.061405429
    p = 0.3275911
    sgn = jnp.where(x >= 0.0, 1.0, -1.0)
    ax = jnp.abs(x)
    t = pl.reciprocal(1.0 + p * ax, approx=True)
    poly = ((((a5 * t + a4) * t + a3) * t + a2) * t + a1) * t
    return sgn * (1.0 - poly * jnp.exp(-ax * ax))


def _gelu(x):
    # erf-based GELU, matching torch.nn.GELU() default
    return 0.5 * x * (1.0 + _erf(x * SQRT1_2))


def _layernorm(v, g, b):
    # two-pass (centered) LayerNorm: robust to |mean| >> std, matches nn.LayerNorm semantics
    mu = jnp.mean(v, axis=-1, keepdims=True)
    c = v - mu
    var = jnp.mean(c * c, axis=-1, keepdims=True)
    return c * lax.rsqrt(var + EPS) * g + b


# ------------------------------------------ kernel ------------------------------------------
def trend_block_kernel(x_ref, wbig_ref, params_ref, o_ref):
    x = x_ref[...]                                                               # (B*T, D)

    # zero-cost static row slices out of the single packed parameter operand
    wf      = params_ref[R_WFRONT:R_WFRONT + D, :]                               # (D, SK*N)
    selwlin = params_ref[R_SELWLIN:R_SELWLIN + SK * N, :]                        # (SK*N, D)
    w0      = params_ref[R_W0:R_W0 + D, :]                                       # (D, D)
    lbias   = params_ref[R_LBIAS:R_LBIAS + BT, :]                                # (B*T, D)
    bfront  = params_ref[R_BFRONT:R_BFRONT + 1, :]                               # (1, SK*N)
    b0      = params_ref[R_B0:R_B0 + 1, :]
    g1      = params_ref[R_G1:R_G1 + 1, :]
    b1      = params_ref[R_B1:R_B1 + 1, :]
    g2      = params_ref[R_G2:R_G2 + 1, :]
    b2      = params_ref[R_B2:R_B2 + 1, :]

    # (1) fused affine front-end (start_conv + mixprop propagation + 1x1 mlp) -> one matmul
    m = _gelu(jnp.dot(x, wf, preferred_element_type=jnp.float32) + bfront)       # (B*T, SK*N)

    # (2) fused end_conv + GraphBlock.linear:
    #     u[(sk,b,s), (sk',v)] = sum_t wend[s,sk,t] * m[(b,t), (sk',v)] ; the iota-generated
    #     block mask keeps sk == sk', selwlin folds the node->d_model linear, and the sk-sum is
    #     a balanced tree of sublane-aligned row-block adds (no lane-dim reshape, no transpose).
    u = jnp.dot(wbig_ref[...], m, preferred_element_type=jnp.float32)            # (SK*BT, SK*N)
    row_sk = lax.broadcasted_iota(jnp.int32, (SK * BT, SK * N), 0) >> ROW_SHIFT
    col_sk = lax.broadcasted_iota(jnp.int32, (SK * BT, SK * N), 1) >> COL_SHIFT
    u = jnp.where(row_sk == col_sk, u, 0.0)
    lp = jnp.dot(u, selwlin, preferred_element_type=jnp.float32)                 # (SK*BT, D)
    blocks = [lp[i * BT:(i + 1) * BT, :] for i in range(SK)]
    while len(blocks) > 1:
        nxt = [blocks[j] + blocks[j + 1] for j in range(0, len(blocks) - 1, 2)]
        if len(blocks) % 2 == 1:
            nxt.append(blocks[-1])
        blocks = nxt
    l = blocks[0] + lbias                                                        # (B*T, D)

    # (3) GraphBlock.norm(x + linear(end_conv(...)))
    y = _layernorm(x + l, g1, b1)

    # (4) TrendBlock: norm(linear0(y)) -> gelu -> + x
    z = jnp.dot(y, w0, preferred_element_type=jnp.float32) + b0
    z = _layernorm(z, g2, b2)
    o_ref[...] = (_gelu(z) + x).astype(o_ref.dtype)


def trend_block_pallas(x, p):
    x2 = x.reshape(BT, D)
    bytes_accessed = 4 * (BT * D                 # x
                          + SK * BT * BT         # wbig
                          + PROWS * D            # packed params
                          + BT * D)              # output
    out = pl.pallas_call(
        trend_block_kernel,
        out_shape=jax.ShapeDtypeStruct((BT, D), jnp.float32),
        # grid-less single invocation; whole operands live in VMEM (<1 MiB working set).
        in_specs=[pl.BlockSpec(memory_space=pltpu.MemorySpace.VMEM)] * 3,
        out_specs=pl.BlockSpec(memory_space=pltpu.MemorySpace.VMEM),
        cost_estimate=pl.CostEstimate(flops=470_000, transcendentals=2_100,
                                      bytes_accessed=bytes_accessed),
    )(x2, p["wbig"], p["packed"])
    return out.reshape(B, T, D)


# ------------------------------- deterministic parameter setup ------------------------------
def build_params(key):
    ks = jax.random.split(key, 12)

    def rn(k, shape, scale=0.1):
        return np.asarray(jax.random.normal(k, shape, dtype=jnp.float32)) * scale

    nv1 = rn(ks[0], (N, NODE_DIM), 1.0)           # nodevec1
    nv2 = rn(ks[1], (NODE_DIM, N), 1.0)           # nodevec2
    wsc = rn(ks[2], (CC, K))                      # start_conv weight (CC,1,K,1) -> (CC,K)
    bsc = rn(ks[3], (CC,))
    wmlp = rn(ks[4], (SK, (G + 1) * CC))          # mixprop mlp 1x1 conv weight
    bmlp = rn(ks[5], (SK,))
    wend = rn(ks[6], (T, SK, T))                  # end_conv weight (T,SK,1,T) -> (T,SK,T)
    bend = rn(ks[7], (T,))
    wlin = rn(ks[8], (N, D))                      # GraphBlock.linear (weight.T)
    blin = rn(ks[9], (D,))
    w0 = rn(ks[10], (D, D))                       # linear0 (weight.T)
    b0 = rn(ks[11], (D,))
    g1 = np.ones((D,), np.float32); b1 = np.zeros((D,), np.float32)   # LayerNorm defaults
    g2 = np.ones((D,), np.float32); b2 = np.zeros((D,), np.float32)

    # adp = softmax(relu(nv1 @ nv2), dim=1); a = (adp + I) / rowsum   (mixprop normalization)
    logits = np.maximum(nv1 @ nv2, 0.0)
    ex = np.exp(logits - logits.max(axis=1, keepdims=True))
    adp = ex / ex.sum(axis=1, keepdims=True)
    adj = adp + np.eye(N, dtype=np.float32)
    a_norm = (adj / adj.sum(axis=1, keepdims=True)).astype(np.float32)

    # start_conv unfolded into a (D, CC*N) matrix: H0[t, cc*N+v] = sum_k wsc[cc,k] x[t, v+k]
    wsb = np.zeros((D, CC * N), np.float32)
    for cc in range(CC):
        for v in range(N):
            wsb[v:v + K, cc * N + v] = wsc[cc]
    bsb = np.repeat(bsc, N)

    # nconv: H'[t, cc*N+v] = sum_w H[t, cc*N+w] * a[v,w]  ->  block-diag kron(I_CC, a^T)
    abig = np.kron(np.eye(CC, dtype=np.float32), a_norm.T).astype(np.float32)

    # mixprop mlp per propagation depth: Wm[i][cc*N+w, sk*N+v] = wmlp[sk, i*CC+cc] * (w==v)
    wm = np.zeros((G + 1, CC * N, SK * N), np.float32)
    for i in range(G + 1):
        wm[i] = np.kron(wmlp[:, i * CC:(i + 1) * CC].T, np.eye(N, dtype=np.float32))
    bm = np.repeat(bmlp, N)

    # ---- fold the WHOLE affine front-end into one matrix: m_lin = x @ wfront + bfront ------
    # h_i = h0 @ P_i with P_0 = I, P_i = alpha*I + (1-alpha)*P_{i-1} @ abig
    # m_lin = sum_i h_i @ wm[i] + bm = (x @ wsb + bsb) @ Q + bm,   Q = sum_i P_i @ wm[i]
    P = np.eye(CC * N, dtype=np.float32)
    Q = P @ wm[0]
    for i in range(1, G + 1):
        P = ALPHA * np.eye(CC * N, dtype=np.float32) + (1.0 - ALPHA) * (P @ abig)
        Q = Q + P @ wm[i]
    wfront = (wsb @ Q).astype(np.float32)                  # (D, SK*N)
    bfront = (bsb @ Q + bm).astype(np.float32)             # (SK*N,)

    # ---- fused end_conv + GraphBlock.linear ------------------------------------------------
    # wbig[sk*BT + b*T + s, b*T + t] = wend[s, sk, t]  (block-diagonal over batch)
    wbig = np.zeros((SK * BT, BT), np.float32)
    for sk in range(SK):
        for b in range(B):
            for s in range(T):
                wbig[sk * BT + b * T + s, b * T:(b + 1) * T] = wend[s, sk, :]
    # selector that sums each N-wide column block and applies GraphBlock.linear in one step
    # (the per-skip-channel block mask is generated in-kernel from iota; no DMA needed)
    selwlin = np.tile(wlin, (SK, 1)).astype(np.float32)    # (SK*N, D)
    # bias for l = e @ wlin + blin with e-bias bend[s]: bend[s]*sum_v wlin[v,:] + blin
    lbias_row = bend[:, None] * wlin.sum(axis=0)[None, :] + blin[None, :]     # (T, D)
    lbias = np.tile(lbias_row, (B, 1)).astype(np.float32)                     # (B*T, D)

    # ---- pack all small lane-width-32 parameters into ONE (PROWS, D) operand ----------------
    packed = np.zeros((PROWS, D), np.float32)
    packed[R_WFRONT:R_WFRONT + D, :] = wfront
    packed[R_SELWLIN:R_SELWLIN + SK * N, :] = selwlin
    packed[R_W0:R_W0 + D, :] = w0
    packed[R_LBIAS:R_LBIAS + BT, :] = lbias
    packed[R_BFRONT, :] = bfront
    packed[R_B0, :] = b0
    packed[R_G1, :] = g1
    packed[R_B1, :] = b1
    packed[R_G2, :] = g2
    packed[R_B2, :] = b2

    p = dict(wsc=wsc, bsc=bsc, a_norm=a_norm, wmlp=wmlp, bmlp=bmlp, wend=wend, bend=bend,
             wlin=wlin, blin=blin, g1=g1, b1=b1, w0=w0, b0=b0, g2=g2, b2=b2,
             wbig=wbig, packed=packed)
    return {k: jnp.asarray(v, dtype=jnp.float32) for k, v in p.items()}


# ----------------------------- pure-JAX reference (PyTorch semantics) -----------------------
def reference(x, p):
    def gelu(v):
        return 0.5 * v * (1.0 + lax.erf(v * SQRT1_2))

    def ln(v, g, b):
        mu = jnp.mean(v, -1, keepdims=True)
        var = jnp.mean((v - mu) ** 2, -1, keepdims=True)
        return (v - mu) / jnp.sqrt(var + EPS) * g + b

    wsc, bsc, a = p["wsc"], p["bsc"], p["a_norm"]
    wmlp, bmlp = p["wmlp"], p["bmlp"]
    wend, bend = p["wend"], p["bend"]

    win = jnp.stack([x[:, :, v:v + K] for v in range(N)], axis=2)          # (B,T,N,K)
    h0 = jnp.einsum("btvk,ck->bcvt", win, wsc) + bsc[None, :, None, None]  # (B,CC,N,T)
    outs = [h0]
    h = h0
    for _ in range(G):
        h = ALPHA * h0 + (1.0 - ALPHA) * jnp.einsum("bcwt,vw->bcvt", h, a)
        outs.append(h)
    ho = jnp.concatenate(outs, axis=1)                                     # (B,(G+1)CC,N,T)
    m = jnp.einsum("bcvt,sc->bsvt", ho, wmlp) + bmlp[None, :, None, None]  # (B,SK,N,T)
    m = gelu(m)
    e = jnp.einsum("bkvt,skt->bsv", m, wend) + bend[None, :, None]         # (B,T,N)
    l = jnp.einsum("bsv,vd->bsd", e, p["wlin"]) + p["blin"]                # (B,T,D)
    y = ln(x + l, p["g1"], p["b1"])
    z = ln(jnp.einsum("bsd,de->bse", y, p["w0"]) + p["b0"], p["g2"], p["b2"])
    return gelu(z) + x


# --------------------------------------------- main -----------------------------------------
if __name__ == "__main__":
    key = jax.random.PRNGKey(0)
    kx, kp = jax.random.split(key)
    params = build_params(kp)
    x = jax.random.normal(kx, (B, T, D), dtype=jnp.float32)

    out = trend_block_pallas(x, params)
    out = jax.block_until_ready(out)

    ref = reference(x, params)
    np.testing.assert_allclose(np.asarray(out), np.asarray(ref), rtol=2e-2, atol=2e-2)
    print("KERNEL_OK")
</pallas_src>

<mosaic_0001>
module attributes {stable_mosaic.version = 11 : i64} {
  func.func @trend_block_kernel(%arg0: memref<16x32xf32, #tpu.memory_space<vmem>>, %arg1: memref<128x16xf32, #tpu.memory_space<vmem>>, %arg2: memref<120x32xf32, #tpu.memory_space<vmem>>, %arg3: memref<16x32xf32, #tpu.memory_space<vmem>>) attributes {dimension_semantics = [], scalar_prefetch = 0 : i64, scratch_operands = 0 : i64, tpu.core_type = #tpu.core_type<tc>} {
    %c0 = arith.constant 0 : index
    %c0_0 = arith.constant 0 : index
    %0 = vector.load %arg0[%c0, %c0_0] : memref<16x32xf32, #tpu.memory_space<vmem>>, vector<16x32xf32>
    %c0_1 = arith.constant 0 : index
    %c0_2 = arith.constant 0 : index
    %1 = vector.load %arg2[%c0_1, %c0_2] : memref<120x32xf32, #tpu.memory_space<vmem>>, vector<32x32xf32>
    %c32 = arith.constant 32 : index
    %c0_3 = arith.constant 0 : index
    %2 = vector.load %arg2[%c32, %c0_3] : memref<120x32xf32, #tpu.memory_space<vmem>>, vector<32x32xf32>
    %c64 = arith.constant 64 : index
    %c0_4 = arith.constant 0 : index
    %3 = vector.load %arg2[%c64, %c0_4] : memref<120x32xf32, #tpu.memory_space<vmem>>, vector<32x32xf32>
    %c96 = arith.constant 96 : index
    %c0_5 = arith.constant 0 : index
    %4 = vector.load %arg2[%c96, %c0_5] : memref<120x32xf32, #tpu.memory_space<vmem>>, vector<16x32xf32>
    %c112 = arith.constant 112 : index
    %c0_6 = arith.constant 0 : index
    %5 = vector.load %arg2[%c112, %c0_6] : memref<120x32xf32, #tpu.memory_space<vmem>>, vector<1x32xf32>
    %c113 = arith.constant 113 : index
    %c0_7 = arith.constant 0 : index
    %6 = vector.load %arg2[%c113, %c0_7] : memref<120x32xf32, #tpu.memory_space<vmem>>, vector<1x32xf32>
    %c114 = arith.constant 114 : index
    %c0_8 = arith.constant 0 : index
    %7 = vector.load %arg2[%c114, %c0_8] : memref<120x32xf32, #tpu.memory_space<vmem>>, vector<1x32xf32>
    %c115 = arith.constant 115 : index
    %c0_9 = arith.constant 0 : index
    %8 = vector.load %arg2[%c115, %c0_9] : memref<120x32xf32, #tpu.memory_space<vmem>>, vector<1x32xf32>
    %c116 = arith.constant 116 : index
    %c0_10 = arith.constant 0 : index
    %9 = vector.load %arg2[%c116, %c0_10] : memref<120x32xf32, #tpu.memory_space<vmem>>, vector<1x32xf32>
    %c117 = arith.constant 117 : index
    %c0_11 = arith.constant 0 : index
    %10 = vector.load %arg2[%c117, %c0_11] : memref<120x32xf32, #tpu.memory_space<vmem>>, vector<1x32xf32>
    %cst = arith.constant dense<0.000000e+00> : vector<16x32xf32>
    %11 = tpu.matmul %0, %1, %cst {dimension_numbers = #tpu.dot_dimension_numbers<[1], [0], [0], [1], [0, 0, 1, 1], [], []>} : vector<16x32xf32>, vector<32x32xf32>, vector<16x32xf32> -> vector<16x32xf32>
    %12 = vector.broadcast %5 : vector<1x32xf32> to vector<16x32xf32>
    %13 = arith.addf %11, %12 : vector<16x32xf32>
    %cst_12 = arith.constant 5.000000e-01 : f32
    %14 = vector.broadcast %cst_12 : f32 to vector<16x32xf32>
    %15 = arith.mulf %14, %13 : vector<16x32xf32>
    %cst_13 = arith.constant 0.707106769 : f32
    %16 = vector.broadcast %cst_13 : f32 to vector<16x32xf32>
    %17 = arith.mulf %13, %16 : vector<16x32xf32>
    %cst_14 = arith.constant 0.000000e+00 : f32
    %18 = vector.broadcast %cst_14 : f32 to vector<16x32xf32>
    %19 = arith.cmpf oge, %17, %18 : vector<16x32xf32>
    %cst_15 = arith.constant 1.000000e+00 : f32
    %cst_16 = arith.constant -1.000000e+00 : f32
    %20 = vector.broadcast %cst_15 : f32 to vector<16x32xf32>
    %21 = vector.broadcast %cst_16 : f32 to vector<16x32xf32>
    %22 = arith.select %19, %20, %21 : vector<16x32xi1>, vector<16x32xf32>
    %23 = math.absf %17 : vector<16x32xf32>
    %cst_17 = arith.constant 0.327591091 : f32
    %24 = vector.broadcast %cst_17 : f32 to vector<16x32xf32>
    %25 = arith.mulf %24, %23 : vector<16x32xf32>
    %cst_18 = arith.constant 1.000000e+00 : f32
    %26 = vector.broadcast %cst_18 : f32 to vector<16x32xf32>
    %27 = arith.addf %26, %25 : vector<16x32xf32>
    %28 = tpu.reciprocal %27 {approx = true} : vector<16x32xf32> -> vector<16x32xf32>
    %cst_19 = arith.constant 1.06140542 : f32
    %29 = vector.broadcast %cst_19 : f32 to vector<16x32xf32>
    %30 = arith.mulf %29, %28 : vector<16x32xf32>
    %cst_20 = arith.constant -1.45315206 : f32
    %31 = vector.broadcast %cst_20 : f32 to vector<16x32xf32>
    %32 = arith.addf %30, %31 : vector<16x32xf32>
    %33 = arith.mulf %32, %28 : vector<16x32xf32>
    %cst_21 = arith.constant 1.42141378 : f32
    %34 = vector.broadcast %cst_21 : f32 to vector<16x32xf32>
    %35 = arith.addf %33, %34 : vector<16x32xf32>
    %36 = arith.mulf %35, %28 : vector<16x32xf32>
    %cst_22 = arith.constant -0.284496725 : f32
    %37 = vector.broadcast %cst_22 : f32 to vector<16x32xf32>
    %38 = arith.addf %36, %37 : vector<16x32xf32>
    %39 = arith.mulf %38, %28 : vector<16x32xf32>
    %cst_23 = arith.constant 0.254829586 : f32
    %40 = vector.broadcast %cst_23 : f32 to vector<16x32xf32>
    %41 = arith.addf %39, %40 : vector<16x32xf32>
    %42 = arith.mulf %41, %28 : vector<16x32xf32>
    %cst_24 = arith.constant 0.000000e+00 : f32
    %43 = vector.broadcast %cst_24 : f32 to vector<16x32xf32>
    %44 = arith.subf %43, %23 : vector<16x32xf32>
    %45 = arith.mulf %44, %23 : vector<16x32xf32>
    %46 = math.exp %45 : vector<16x32xf32>
    %47 = arith.mulf %42, %46 : vector<16x32xf32>
    %cst_25 = arith.constant 1.000000e+00 : f32
    %48 = vector.broadcast %cst_25 : f32 to vector<16x32xf32>
    %49 = arith.subf %48, %47 : vector<16x32xf32>
    %50 = arith.mulf %22, %49 : vector<16x32xf32>
    %cst_26 = arith.constant 1.000000e+00 : f32
    %51 = vector.broadcast %cst_26 : f32 to vector<16x32xf32>
    %52 = arith.addf %51, %50 : vector<16x32xf32>
    %53 = arith.mulf %15, %52 : vector<16x32xf32>
    %c0_27 = arith.constant 0 : index
    %c0_28 = arith.constant 0 : index
    %54 = vector.load %arg1[%c0_27, %c0_28] : memref<128x16xf32, #tpu.memory_space<vmem>>, vector<128x16xf32>
    %cst_29 = arith.constant dense<0.000000e+00> : vector<128x32xf32>
    %55 = tpu.matmul %54, %53, %cst_29 {dimension_numbers = #tpu.dot_dimension_numbers<[1], [0], [0], [1], [0, 0, 1, 1], [], []>} : vector<128x16xf32>, vector<16x32xf32>, vector<128x32xf32> -> vector<128x32xf32>
    %56 = tpu.iota {dimensions = array<i32: 0>} : vector<128x32xi32>
    %c4_i32 = arith.constant 4 : i32
    %57 = vector.broadcast %c4_i32 : i32 to vector<128x32xi32>
    %58 = arith.shrsi %56, %57 : vector<128x32xi32>
    %59 = tpu.iota {dimensions = array<i32: 1>} : vector<128x32xi32>
    %c2_i32 = arith.constant 2 : i32
    %60 = vector.broadcast %c2_i32 : i32 to vector<128x32xi32>
    %61 = arith.shrsi %59, %60 : vector<128x32xi32>
    %62 = arith.cmpi eq, %58, %61 : vector<128x32xi32>
    %cst_30 = arith.constant 0.000000e+00 : f32
    %63 = vector.broadcast %cst_30 : f32 to vector<128x32xf32>
    %64 = arith.select %62, %55, %63 : vector<128x32xi1>, vector<128x32xf32>
    %cst_31 = arith.constant dense<0.000000e+00> : vector<128x32xf32>
    %65 = tpu.matmul %64, %2, %cst_31 {dimension_numbers = #tpu.dot_dimension_numbers<[1], [0], [0], [1], [0, 0, 1, 1], [], []>} : vector<128x32xf32>, vector<32x32xf32>, vector<128x32xf32> -> vector<128x32xf32>
    %66 = vector.extract_strided_slice %65 {offsets = [0, 0], sizes = [16, 32], strides = [1, 1]} : vector<128x32xf32> to vector<16x32xf32>
    %67 = vector.extract_strided_slice %65 {offsets = [16, 0], sizes = [16, 32], strides = [1, 1]} : vector<128x32xf32> to vector<16x32xf32>
    %68 = vector.extract_strided_slice %65 {offsets = [32, 0], sizes = [16, 32], strides = [1, 1]} : vector<128x32xf32> to vector<16x32xf32>
    %69 = vector.extract_strided_slice %65 {offsets = [48, 0], sizes = [16, 32], strides = [1, 1]} : vector<128x32xf32> to vector<16x32xf32>
    %70 = vector.extract_strided_slice %65 {offsets = [64, 0], sizes = [16, 32], strides = [1, 1]} : vector<128x32xf32> to vector<16x32xf32>
    %71 = vector.extract_strided_slice %65 {offsets = [80, 0], sizes = [16, 32], strides = [1, 1]} : vector<128x32xf32> to vector<16x32xf32>
    %72 = vector.extract_strided_slice %65 {offsets = [96, 0], sizes = [16, 32], strides = [1, 1]} : vector<128x32xf32> to vector<16x32xf32>
    %73 = vector.extract_strided_slice %65 {offsets = [112, 0], sizes = [16, 32], strides = [1, 1]} : vector<128x32xf32> to vector<16x32xf32>
    %74 = arith.addf %66, %67 : vector<16x32xf32>
    %75 = arith.addf %68, %69 : vector<16x32xf32>
    %76 = arith.addf %70, %71 : vector<16x32xf32>
    %77 = arith.addf %72, %73 : vector<16x32xf32>
    %78 = arith.addf %74, %75 : vector<16x32xf32>
    %79 = arith.addf %76, %77 : vector<16x32xf32>
    %80 = arith.addf %78, %79 : vector<16x32xf32>
    %81 = arith.addf %80, %4 : vector<16x32xf32>
    %82 = arith.addf %0, %81 : vector<16x32xf32>
    %cst_32 = arith.constant dense<0.000000e+00> : vector<16xf32>
    %83 = vector.multi_reduction <add>, %82, %cst_32 [1] : vector<16x32xf32> to vector<16xf32>
    %84 = vector.shape_cast %83 : vector<16xf32> to vector<16x1xf32>
    %cst_33 = arith.constant 3.200000e+01 : f32
    %85 = vector.broadcast %cst_33 : f32 to vector<16x1xf32>
    %86 = arith.divf %84, %85 : vector<16x1xf32>
    %87 = vector.broadcast %86 : vector<16x1xf32> to vector<16x32xf32>
    %88 = arith.subf %82, %87 : vector<16x32xf32>
    %89 = arith.mulf %88, %88 : vector<16x32xf32>
    %cst_34 = arith.constant dense<0.000000e+00> : vector<16xf32>
    %90 = vector.multi_reduction <add>, %89, %cst_34 [1] : vector<16x32xf32> to vector<16xf32>
    %91 = vector.shape_cast %90 : vector<16xf32> to vector<16x1xf32>
    %cst_35 = arith.constant 3.200000e+01 : f32
    %92 = vector.broadcast %cst_35 : f32 to vector<16x1xf32>
    %93 = arith.divf %91, %92 : vector<16x1xf32>
    %cst_36 = arith.constant 9.99999974E-6 : f32
    %94 = vector.broadcast %cst_36 : f32 to vector<16x1xf32>
    %95 = arith.addf %93, %94 : vector<16x1xf32>
    %96 = math.rsqrt %95 : vector<16x1xf32>
    %97 = vector.broadcast %96 : vector<16x1xf32> to vector<16x32xf32>
    %98 = arith.mulf %88, %97 : vector<16x32xf32>
    %99 = vector.broadcast %7 : vector<1x32xf32> to vector<16x32xf32>
    %100 = arith.mulf %98, %99 : vector<16x32xf32>
    %101 = vector.broadcast %8 : vector<1x32xf32> to vector<16x32xf32>
    %102 = arith.addf %100, %101 : vector<16x32xf32>
    %cst_37 = arith.constant dense<0.000000e+00> : vector<16x32xf32>
    %103 = tpu.matmul %102, %3, %cst_37 {dimension_numbers = #tpu.dot_dimension_numbers<[1], [0], [0], [1], [0, 0, 1, 1], [], []>} : vector<16x32xf32>, vector<32x32xf32>, vector<16x32xf32> -> vector<16x32xf32>
    %104 = vector.broadcast %6 : vector<1x32xf32> to vector<16x32xf32>
    %105 = arith.addf %103, %104 : vector<16x32xf32>
    %cst_38 = arith.constant dense<0.000000e+00> : vector<16xf32>
    %106 = vector.multi_reduction <add>, %105, %cst_38 [1] : vector<16x32xf32> to vector<16xf32>
    %107 = vector.shape_cast %106 : vector<16xf32> to vector<16x1xf32>
    %cst_39 = arith.constant 3.200000e+01 : f32
    %108 = vector.broadcast %cst_39 : f32 to vector<16x1xf32>
    %109 = arith.divf %107, %108 : vector<16x1xf32>
    %110 = vector.broadcast %109 : vector<16x1xf32> to vector<16x32xf32>
    %111 = arith.subf %105, %110 : vector<16x32xf32>
    %112 = arith.mulf %111, %111 : vector<16x32xf32>
    %cst_40 = arith.constant dense<0.000000e+00> : vector<16xf32>
    %113 = vector.multi_reduction <add>, %112, %cst_40 [1] : vector<16x32xf32> to vector<16xf32>
    %114 = vector.shape_cast %113 : vector<16xf32> to vector<16x1xf32>
    %cst_41 = arith.constant 3.200000e+01 : f32
    %115 = vector.broadcast %cst_41 : f32 to vector<16x1xf32>
    %116 = arith.divf %114, %115 : vector<16x1xf32>
    %cst_42 = arith.constant 9.99999974E-6 : f32
    %117 = vector.broadcast %cst_42 : f32 to vector<16x1xf32>
    %118 = arith.addf %116, %117 : vector<16x1xf32>
    %119 = math.rsqrt %118 : vector<16x1xf32>
    %120 = vector.broadcast %119 : vector<16x1xf32> to vector<16x32xf32>
    %121 = arith.mulf %111, %120 : vector<16x32xf32>
    %122 = vector.broadcast %9 : vector<1x32xf32> to vector<16x32xf32>
    %123 = arith.mulf %121, %122 : vector<16x32xf32>
    %124 = vector.broadcast %10 : vector<1x32xf32> to vector<16x32xf32>
    %125 = arith.addf %123, %124 : vector<16x32xf32>
    %cst_43 = arith.constant 5.000000e-01 : f32
    %126 = vector.broadcast %cst_43 : f32 to vector<16x32xf32>
    %127 = arith.mulf %126, %125 : vector<16x32xf32>
    %cst_44 = arith.constant 0.707106769 : f32
    %128 = vector.broadcast %cst_44 : f32 to vector<16x32xf32>
    %129 = arith.mulf %125, %128 : vector<16x32xf32>
    %cst_45 = arith.constant 0.000000e+00 : f32
    %130 = vector.broadcast %cst_45 : f32 to vector<16x32xf32>
    %131 = arith.cmpf oge, %129, %130 : vector<16x32xf32>
    %cst_46 = arith.constant 1.000000e+00 : f32
    %cst_47 = arith.constant -1.000000e+00 : f32
    %132 = vector.broadcast %cst_46 : f32 to vector<16x32xf32>
    %133 = vector.broadcast %cst_47 : f32 to vector<16x32xf32>
    %134 = arith.select %131, %132, %133 : vector<16x32xi1>, vector<16x32xf32>
    %135 = math.absf %129 : vector<16x32xf32>
    %cst_48 = arith.constant 0.327591091 : f32
    %136 = vector.broadcast %cst_48 : f32 to vector<16x32xf32>
    %137 = arith.mulf %136, %135 : vector<16x32xf32>
    %cst_49 = arith.constant 1.000000e+00 : f32
    %138 = vector.broadcast %cst_49 : f32 to vector<16x32xf32>
    %139 = arith.addf %138, %137 : vector<16x32xf32>
    %140 = tpu.reciprocal %139 {approx = true} : vector<16x32xf32> -> vector<16x32xf32>
    %cst_50 = arith.constant 1.06140542 : f32
    %141 = vector.broadcast %cst_50 : f32 to vector<16x32xf32>
    %142 = arith.mulf %141, %140 : vector<16x32xf32>
    %cst_51 = arith.constant -1.45315206 : f32
    %143 = vector.broadcast %cst_51 : f32 to vector<16x32xf32>
    %144 = arith.addf %142, %143 : vector<16x32xf32>
    %145 = arith.mulf %144, %140 : vector<16x32xf32>
    %cst_52 = arith.constant 1.42141378 : f32
    %146 = vector.broadcast %cst_52 : f32 to vector<16x32xf32>
    %147 = arith.addf %145, %146 : vector<16x32xf32>
    %148 = arith.mulf %147, %140 : vector<16x32xf32>
    %cst_53 = arith.constant -0.284496725 : f32
    %149 = vector.broadcast %cst_53 : f32 to vector<16x32xf32>
    %150 = arith.addf %148, %149 : vector<16x32xf32>
    %151 = arith.mulf %150, %140 : vector<16x32xf32>
    %cst_54 = arith.constant 0.254829586 : f32
    %152 = vector.broadcast %cst_54 : f32 to vector<16x32xf32>
    %153 = arith.addf %151, %152 : vector<16x32xf32>
    %154 = arith.mulf %153, %140 : vector<16x32xf32>
    %cst_55 = arith.constant 0.000000e+00 : f32
    %155 = vector.broadcast %cst_55 : f32 to vector<16x32xf32>
    %156 = arith.subf %155, %135 : vector<16x32xf32>
    %157 = arith.mulf %156, %135 : vector<16x32xf32>
    %158 = math.exp %157 : vector<16x32xf32>
    %159 = arith.mulf %154, %158 : vector<16x32xf32>
    %cst_56 = arith.constant 1.000000e+00 : f32
    %160 = vector.broadcast %cst_56 : f32 to vector<16x32xf32>
    %161 = arith.subf %160, %159 : vector<16x32xf32>
    %162 = arith.mulf %134, %161 : vector<16x32xf32>
    %cst_57 = arith.constant 1.000000e+00 : f32
    %163 = vector.broadcast %cst_57 : f32 to vector<16x32xf32>
    %164 = arith.addf %163, %162 : vector<16x32xf32>
    %165 = arith.mulf %127, %164 : vector<16x32xf32>
    %166 = arith.addf %165, %0 : vector<16x32xf32>
    %c0_58 = arith.constant 0 : index
    %c0_59 = arith.constant 0 : index
    %167 = vector.load %arg3[%c0_58, %c0_59] : memref<16x32xf32, #tpu.memory_space<vmem>>, vector<16x32xf32>
    tpu.vector_store %arg3[%c0_58, %c0_59], %166 {strides = array<i32>} : memref<16x32xf32, #tpu.memory_space<vmem>>, vector<16x32xf32>,
    return
  }
}

</mosaic_0001>

<llo_original>
// kernel: tpu_custom_call.1
$region0: #{tpu_custom_call.1}
  #allocation0 [shape = 'u32[]', space=smem, size = 0x4, offset = 0x4, fixed_abs, tag = 'smem constant byte address 0x4 - core index']
  #allocation1 [shape = 'u32[144,128]{1,0:T(1,128)}', space=vmem, size = 0x12000, scoped, tag = 'internal scratch']
  %s0 = inlined_call_operand.vmem [shape: f32[16,32], index: 0, kind: input, shape index: {}]
  %s1 = inlined_call_operand.vmem [shape: f32[128,16], index: 1, kind: input, shape index: {}]
  %s2 = inlined_call_operand.vmem [shape: f32[120,32], index: 2, kind: input, shape index: {}]
  %s3 = inlined_call_operand.hbm [shape: f32[16,32], index: 3, kind: output, shape index: {}]
  %s4 = sld [smem:[#allocation0]]
  $region22: #{tpu_custom_call.1} parent=0
    _
  %s6 = ssub.s32 1, %s4
  %s7 = scalar_select 0, %s6, %s4
  $region1: #{tpu_custom_call.1} parent=0
    #allocation2 [shape = 'u8[8192]{0}', space=vmem, size = 0x2000, scoped, tag = 'output window, operand 0, single buffered']
    #allocation3 [shape = 's32[1]{0}', space=sflag, size = 0x4, scoped, tag = 'scoped memory for tpu_custom_call.1']
    %8 = vsyncpa [#allocation3], 0
    // Predicated region
    $region2: #{tpu_custom_call.1} parent=1 // pred_check
      _
    $region3: #{tpu_custom_call.1} parent=1 // pred_check_branch
      %10 = sbr.rel (0) target = $region5
    $region4: #{tpu_custom_call.1} parent=1 // pred_region
      _
    $region5: #{tpu_custom_call.1} parent=1 // pred_fallthru
      _
    // Predicated region
    $region6: #{tpu_custom_call.1} parent=1 // pred_check
      _
    $region7: #{tpu_custom_call.1} parent=1 // pred_check_branch
      %12 = sbr.rel (0) target = $region9
    $region8: #{tpu_custom_call.1} parent=1 // pred_region
      _
    $region9: #{tpu_custom_call.1} parent=1 // pred_fallthru
      _
    // Predicated region
    $region10: #{tpu_custom_call.1} parent=1 // pred_check
      _
    $region11: #{tpu_custom_call.1} parent=1 // pred_check_branch
      %14 = sbr.rel (0) target = $region13
    $region12: #{tpu_custom_call.1} parent=1 // pred_region
      _
    $region13: #{tpu_custom_call.1} parent=1 // pred_fallthru
      _
    %v15 = vld [vmem:[%s0] sm:$0xff]
    %v16 = vld [vmem:[%s0 + $0x8] sm:$0xff]
    %v17 = vld [vmem:[%s2] sm:$0xff]
    %v18 = vld [vmem:[%s2 + $0x8] sm:$0xff]
    %v19 = vld [vmem:[%s2 + $0x10] sm:$0xff]
    %v20 = vld [vmem:[%s2 + $0x18] sm:$0xff]
    %v21 = vld [vmem:[%s2 + $0x20] sm:$0xff]
    %v22 = vld [vmem:[%s2 + $0x28] sm:$0xff]
    %v23 = vld [vmem:[%s2 + $0x30] sm:$0xff]
    %v24 = vld [vmem:[%s2 + $0x38] sm:$0xff]
    %v25 = vld [vmem:[%s2 + $0x40] sm:$0xff]
    %v26 = vld [vmem:[%s2 + $0x48] sm:$0xff]
    %v27 = vld [vmem:[%s2 + $0x50] sm:$0xff]
    %v28 = vld [vmem:[%s2 + $0x58] sm:$0xff]
    %v29 = vld [vmem:[%s2 + $0x60] sm:$0xff]
    %v30 = vld [vmem:[%s2 + $0x68] sm:$0xff]
    %v31 = vld [vmem:[%s2 + $0x70] sm:$0x1]
    %v32 = vld [vmem:[%s2 + $0x71] sm:$0x1]
    %v33 = vld [vmem:[%s2 + $0x72] sm:$0x1]
    %v34 = vld [vmem:[%s2 + $0x73] sm:$0x1]
    %v35 = vld [vmem:[%s2 + $0x74] sm:$0x1]
    %v36 = vld [vmem:[%s2 + $0x75] sm:$0x1]
    %v37 = vlaneseq
    %v38 = vshrl.u32 %v37, 7
    %v39 = vsub.s32 0, %v38
    %v40 = vrot.slane %v31, %v39
    %vm41 = vcmask 261120
    %v43 = vsel %vm41, %v15, 0
    %v46 = vsel %vm41, %v16, 0
    %48 = vmatprep.subr.mxu0 0.0
    %49 = vmatpush1.msra.mxu0 %v17
    %50 = vmatprep.subr.mxu0 0.0
    %51 = vmatpush1.msra.mxu0 %v18
    %52 = vmatprep.subr.mxu0 0.0
    %53 = vmatpush1.msra.mxu0 %v19
    %54 = vmatprep.subr.mxu0 0.0
    %55 = vmatpush1.msra.mxu0 %v20
    %56 = vmatprep.subr.mxu0 0.0
    %57 = vmatpush1.msra.mxu0 0.0
    %58 = vmatprep.subr.mxu0 0.0
    %59 = vmatpush1.msra.mxu0 0.0
    %60 = vmatprep.subr.mxu0 0.0
    %61 = vmatpush1.msra.mxu0 0.0
    %62 = vmatprep.subr.mxu0 0.0
    %63 = vmatpush1.msra.mxu0 0.0
    %64 = vmatprep.subr.mxu0 0.0
    %65 = vmatpush1.msra.mxu0 0.0
    %66 = vmatprep.subr.mxu0 0.0
    %67 = vmatpush1.msra.mxu0 0.0
    %68 = vmatprep.subr.mxu0 0.0
    %69 = vmatpush1.msra.mxu0 0.0
    %70 = vmatprep.subr.mxu0 0.0
    %71 = vmatpush1.msra.mxu0 0.0
    %72 = vmatprep.subr.mxu0 0.0
    %73 = vmatpush1.msra.mxu0 0.0
    %74 = vmatprep.subr.mxu0 0.0
    %75 = vmatpush1.msra.mxu0 0.0
    %76 = vmatprep.subr.mxu0 0.0
    %77 = vmatpush1.msra.mxu0 0.0
    %78 = vmatprep.subr.mxu0 0.0
    %79 = vmatpush1.msra.mxu0 0.0
    %80 = vmatprep.subr.mxu0 0.0
    %81 = vmatpush1.msra.mxu0 0.0
    %82 = vmatprep.subr.mxu0 0.0
    %83 = vmatpush1.msra.mxu0 0.0
    %84 = vmatprep.subr.mxu0 0.0
    %85 = vmatpush1.msra.mxu0 0.0
    %86 = vmatprep.subr.mxu0 0.0
    %87 = vmatpush1.msra.mxu0 0.0
    %88 = vmatprep.subr.mxu0 0.0
    %89 = vmatpush1.msra.mxu0 0.0
    %90 = vmatprep.subr.mxu0 0.0
    %91 = vmatpush1.msra.mxu0 0.0
    %92 = vmatprep.subr.mxu0 0.0
    %93 = vmatpush1.msra.mxu0 0.0
    %94 = vmatprep.subr.mxu0 0.0
    %95 = vmatpush1.msra.mxu0 0.0
    %96 = vmatprep.subr.mxu0 0.0
    %97 = vmatpush1.msra.mxu0 0.0
    %98 = vmatprep.subr.mxu0 0.0
    %99 = vmatpush1.msra.mxu0 0.0
    %100 = vmatprep.subr.mxu0 0.0
    %101 = vmatpush1.msra.mxu0 0.0
    %102 = vmatprep.subr.mxu0 0.0
    %103 = vmatpush1.msra.mxu0 0.0
    %104 = vmatprep.subr.mxu0 0.0
    %105 = vmatpush1.msra.mxu0 0.0
    %106 = vmatprep.subr.mxu0 0.0
    %107 = vmatpush1.msra.mxu0 0.0
    %108 = vmatprep.subr.mxu0 0.0
    %109 = vmatpush1.msra.mxu0 0.0
    %110 = vmatprep.subr.mxu0 0.0
    %111 = vmatpush1.msra.mxu0 0.0
    %112 = vmatprep.mubr.f32.mxu0 0.0
    %113 = vmatmul.mubr.f32.gmra.mrb[0].mxu0 %v43
    %v114 = vpop.f32.mrb[0].mxu0
    %v115 = vadd.f32 %v40, %v114
    %v116 = vpop.f32.mrb[0].mxu0
    %117 = vmatprep.mubr.f32.mxu0 0.0
    %118 = vmatmul.mubr.f32.gmra.mrb[0].mxu0 %v46
    %v119 = vpop.f32.mrb[0].mxu0
    %v120 = vadd.f32 %v40, %v119
    %v121 = vpop.f32.mrb[0].mxu0
    %122 = vdwg.mxu0
    %v123 = vmul.f32 %v115, 0.5
    %v124 = vmul.f32 %v120, 0.5
    %v125 = vmul.f32 %v115, 0.70710677
    %v126 = vmul.f32 %v120, 0.70710677
    %vm127 = vcmp.ge.f32.partialorder %v125, 0.0
    %vm128 = vcmp.ge.f32.partialorder %v126, 0.0
    %v129 = vsel %vm127, 1.0, -1.0
    %v130 = vsel %vm128, 1.0, -1.0
    %v131 = vand.u32 2147483647, %v125
    %v132 = vand.u32 2147483647, %v126
    %v133 = vmul.f32 %v131, 0.3275911
    %v134 = vmul.f32 %v132, 0.3275911
    %v135 = vadd.f32 %v133, 1.0
    %v136 = vadd.f32 %v134, 1.0
    %v137 = vrcp.pop %v135
    %v138 = vrcp.pop %v136
    %v139 = vmul.f32 %v137, 1.0614054
    %v140 = vmul.f32 %v138, 1.0614054
    %v141 = vadd.f32 %v139, -1.4531521
    %v142 = vadd.f32 %v140, -1.4531521
    %v143 = vmul.f32 %v141, %v137
    %v144 = vmul.f32 %v142, %v138
    %v145 = vadd.f32 %v143, 1.4214138
    %v146 = vadd.f32 %v144, 1.4214138
    %v147 = vmul.f32 %v145, %v137
    %v148 = vmul.f32 %v146, %v138
    %v149 = vadd.f32 %v147, -0.28449672
    %v150 = vadd.f32 %v148, -0.28449672
    %v151 = vmul.f32 %v149, %v137
    %v152 = vmul.f32 %v150, %v138
    %v153 = vadd.f32 %v151, 0.2548296
    %v154 = vadd.f32 %v152, 0.2548296
    %v155 = vmul.f32 %v153, %v137
    %v156 = vmul.f32 %v154, %v138
    %v157 = vsub.f32 0.0, %v131
    %v158 = vsub.f32 0.0, %v132
    %v159 = vmul.f32 %v157, %v131
    %v160 = vmul.f32 %v158, %v132
    %v161 = vmul.f32 %v159, 1.442695
    %v162 = vpow.pop %v161
    %v163 = vmul.f32 %v160, 1.442695
    %v164 = vpow.pop %v163
    %v165 = vmul.f32 %v155, %v162
    %v166 = vmul.f32 %v156, %v164
    %v167 = vsub.f32 1.0, %v165
    %v168 = vsub.f32 1.0, %v166
    %v169 = vmul.f32 %v129, %v167
    %v170 = vmul.f32 %v130, %v168
    %v171 = vadd.f32 %v169, 1.0
    %v172 = vadd.f32 %v170, 1.0
    %v173 = vmul.f32 %v123, %v171
    %v174 = vmul.f32 %v124, %v172
    %v175 = vld [vmem:[%s1] sm:$0xff]
    %v176 = vld [vmem:[%s1 + $0x8] sm:$0xff]
    %v177 = vld [vmem:[%s1 + $0x10] sm:$0xff]
    %v178 = vld [vmem:[%s1 + $0x18] sm:$0xff]
    %v179 = vld [vmem:[%s1 + $0x20] sm:$0xff]
    %v180 = vld [vmem:[%s1 + $0x28] sm:$0xff]
    %v181 = vld [vmem:[%s1 + $0x30] sm:$0xff]
    %v182 = vld [vmem:[%s1 + $0x38] sm:$0xff]
    %v183 = vld [vmem:[%s1 + $0x40] sm:$0xff]
    %v184 = vld [vmem:[%s1 + $0x48] sm:$0xff]
    %v185 = vld [vmem:[%s1 + $0x50] sm:$0xff]
    %v186 = vld [vmem:[%s1 + $0x58] sm:$0xff]
    %v187 = vld [vmem:[%s1 + $0x60] sm:$0xff]
    %v188 = vld [vmem:[%s1 + $0x68] sm:$0xff]
    %v189 = vld [vmem:[%s1 + $0x70] sm:$0xff]
    %v190 = vld [vmem:[%s1 + $0x78] sm:$0xff]
    %vm191 = vcmask 130048
    %v193 = vsel %vm191, %v175, 0
    %v196 = vsel %vm191, %v176, 0
    %v199 = vsel %vm191, %v177, 0
    %v202 = vsel %vm191, %v178, 0
    %v205 = vsel %vm191, %v179, 0
    %v208 = vsel %vm191, %v180, 0
    %v211 = vsel %vm191, %v181, 0
    %v214 = vsel %vm191, %v182, 0
    %v217 = vsel %vm191, %v183, 0
    %v220 = vsel %vm191, %v184, 0
    %v223 = vsel %vm191, %v185, 0
    %v226 = vsel %vm191, %v186, 0
    %v229 = vsel %vm191, %v187, 0
    %v232 = vsel %vm191, %v188, 0
    %v235 = vsel %vm191, %v189, 0
    %v238 = vsel %vm191, %v190, 0
    %240 = vmatprep.subr.mxu0 0.0
    %241 = vmatpush1.msra.mxu0 %v173
    %242 = vmatprep.subr.mxu0 0.0
    %243 = vmatpush1.msra.mxu0 %v174
    %244 = vmatprep.subr.mxu0 0.0
    %245 = vmatpush1.msra.mxu0 0.0
    %246 = vmatprep.subr.mxu0 0.0
    %247 = vmatpush1.msra.mxu0 0.0
    %248 = vmatprep.subr.mxu0 0.0
    %249 = vmatpush1.msra.mxu0 0.0
    %250 = vmatprep.subr.mxu0 0.0
    %251 = vmatpush1.msra.mxu0 0.0
    %252 = vmatprep.subr.mxu0 0.0
    %253 = vmatpush1.msra.mxu0 0.0
    %254 = vmatprep.subr.mxu0 0.0
    %255 = vmatpush1.msra.mxu0 0.0
    %256 = vmatprep.subr.mxu0 0.0
    %257 = vmatpush1.msra.mxu0 0.0
    %258 = vmatprep.subr.mxu0 0.0
    %259 = vmatpush1.msra.mxu0 0.0
    %260 = vmatprep.subr.mxu0 0.0
    %261 = vmatpush1.msra.mxu0 0.0
    %262 = vmatprep.subr.mxu0 0.0
    %263 = vmatpush1.msra.mxu0 0.0
    %264 = vmatprep.subr.mxu0 0.0
    %265 = vmatpush1.msra.mxu0 0.0
    %266 = vmatprep.subr.mxu0 0.0
    %267 = vmatpush1.msra.mxu0 0.0
    %268 = vmatprep.subr.mxu0 0.0
    %269 = vmatpush1.msra.mxu0 0.0
    %270 = vmatprep.subr.mxu0 0.0
    %271 = vmatpush1.msra.mxu0 0.0
    %272 = vmatprep.subr.mxu0 0.0
    %273 = vmatpush1.msra.mxu0 0.0
    %274 = vmatprep.subr.mxu0 0.0
    %275 = vmatpush1.msra.mxu0 0.0
    %276 = vmatprep.subr.mxu0 0.0
    %277 = vmatpush1.msra.mxu0 0.0
    %278 = vmatprep.subr.mxu0 0.0
    %279 = vmatpush1.msra.mxu0 0.0
    %280 = vmatprep.subr.mxu0 0.0
    %281 = vmatpush1.msra.mxu0 0.0
    %282 = vmatprep.subr.mxu0 0.0
    %283 = vmatpush1.msra.mxu0 0.0
    %284 = vmatprep.subr.mxu0 0.0
    %285 = vmatpush1.msra.mxu0 0.0
    %286 = vmatprep.subr.mxu0 0.0
    %287 = vmatpush1.msra.mxu0 0.0
    %288 = vmatprep.subr.mxu0 0.0
    %289 = vmatpush1.msra.mxu0 0.0
    %290 = vmatprep.subr.mxu0 0.0
    %291 = vmatpush1.msra.mxu0 0.0
    %292 = vmatprep.subr.mxu0 0.0
    %293 = vmatpush1.msra.mxu0 0.0
    %294 = vmatprep.subr.mxu0 0.0
    %295 = vmatpush1.msra.mxu0 0.0
    %296 = vmatprep.subr.mxu0 0.0
    %297 = vmatpush1.msra.mxu0 0.0
    %298 = vmatprep.subr.mxu0 0.0
    %299 = vmatpush1.msra.mxu0 0.0
    %300 = vmatprep.subr.mxu0 0.0
    %301 = vmatpush1.msra.mxu0 0.0
    %302 = vmatprep.subr.mxu0 0.0
    %303 = vmatpush1.msra.mxu0 0.0
    %304 = vmatprep.mubr.f32.mxu0 0.0
    %305 = vmatmul.mubr.f32.gmra.mrb[0].mxu0 %v193
    %v306 = vpop.f32.mrb[0].mxu0
    %v307 = vadd.f32 0.0, %v306
    %v308 = vpop.f32.mrb[0].mxu0
    %309 = vmatprep.mubr.f32.mxu0 0.0
    %310 = vmatmul.mubr.f32.gmra.mrb[0].mxu0 %v196
    %v311 = vpop.f32.mrb[0].mxu0
    %v312 = vadd.f32 0.0, %v311
    %v313 = vpop.f32.mrb[0].mxu0
    %314 = vmatprep.mubr.f32.mxu0 0.0
    %315 = vmatmul.mubr.f32.gmra.mrb[0].mxu0 %v199
    %v316 = vpop.f32.mrb[0].mxu0
    %v317 = vadd.f32 0.0, %v316
    %v318 = vpop.f32.mrb[0].mxu0
    %319 = vmatprep.mubr.f32.mxu0 0.0
    %320 = vmatmul.mubr.f32.gmra.mrb[0].mxu0 %v202
    %v321 = vpop.f32.mrb[0].mxu0
    %v322 = vadd.f32 0.0, %v321
    %v323 = vpop.f32.mrb[0].mxu0
    %324 = vmatprep.mubr.f32.mxu0 0.0
    %325 = vmatmul.mubr.f32.gmra.mrb[0].mxu0 %v205
    %v326 = vpop.f32.mrb[0].mxu0
    %v327 = vadd.f32 0.0, %v326
    %v328 = vpop.f32.mrb[0].mxu0
    %329 = vmatprep.mubr.f32.mxu0 0.0
    %330 = vmatmul.mubr.f32.gmra.mrb[0].mxu0 %v208
    %v331 = vpop.f32.mrb[0].mxu0
    %v332 = vadd.f32 0.0, %v331
    %v333 = vpop.f32.mrb[0].mxu0
    %334 = vmatprep.mubr.f32.mxu0 0.0
    %335 = vmatmul.mubr.f32.gmra.mrb[0].mxu0 %v211
    %v336 = vpop.f32.mrb[0].mxu0
    %v337 = vadd.f32 0.0, %v336
    %v338 = vpop.f32.mrb[0].mxu0
    %339 = vmatprep.mubr.f32.mxu0 0.0
    %340 = vmatmul.mubr.f32.gmra.mrb[0].mxu0 %v214
    %v341 = vpop.f32.mrb[0].mxu0
    %v342 = vadd.f32 0.0, %v341
    %v343 = vpop.f32.mrb[0].mxu0
    %344 = vmatprep.mubr.f32.mxu0 0.0
    %345 = vmatmul.mubr.f32.gmra.mrb[0].mxu0 %v217
    %v346 = vpop.f32.mrb[0].mxu0
    %v347 = vadd.f32 0.0, %v346
    %v348 = vpop.f32.mrb[0].mxu0
    %349 = vmatprep.mubr.f32.mxu0 0.0
    %350 = vmatmul.mubr.f32.gmra.mrb[0].mxu0 %v220
    %v351 = vpop.f32.mrb[0].mxu0
    %v352 = vadd.f32 0.0, %v351
    %v353 = vpop.f32.mrb[0].mxu0
    %354 = vmatprep.mubr.f32.mxu0 0.0
    %355 = vmatmul.mubr.f32.gmra.mrb[0].mxu0 %v223
    %v356 = vpop.f32.mrb[0].mxu0
    %v357 = vadd.f32 0.0, %v356
    %v358 = vpop.f32.mrb[0].mxu0
    %359 = vmatprep.mubr.f32.mxu0 0.0
    %360 = vmatmul.mubr.f32.gmra.mrb[0].mxu0 %v226
    %v361 = vpop.f32.mrb[0].mxu0
    %v362 = vadd.f32 0.0, %v361
    %v363 = vpop.f32.mrb[0].mxu0
    %364 = vmatprep.mubr.f32.mxu0 0.0
    %365 = vmatmul.mubr.f32.gmra.mrb[0].mxu0 %v229
    %v366 = vpop.f32.mrb[0].mxu0
    %v367 = vadd.f32 0.0, %v366
    %v368 = vpop.f32.mrb[0].mxu0
    %369 = vmatprep.mubr.f32.mxu0 0.0
    %370 = vmatmul.mubr.f32.gmra.mrb[0].mxu0 %v232
    %v371 = vpop.f32.mrb[0].mxu0
    %v372 = vadd.f32 0.0, %v371
    %v373 = vpop.f32.mrb[0].mxu0
    %374 = vmatprep.mubr.f32.mxu0 0.0
    %375 = vmatmul.mubr.f32.gmra.mrb[0].mxu0 %v235
    %v376 = vpop.f32.mrb[0].mxu0
    %v377 = vadd.f32 0.0, %v376
    %v378 = vpop.f32.mrb[0].mxu0
    %379 = vmatprep.mubr.f32.mxu0 0.0
    %380 = vmatmul.mubr.f32.gmra.mrb[0].mxu0 %v238
    %v381 = vpop.f32.mrb[0].mxu0
    %v382 = vadd.f32 0.0, %v381
    %v383 = vpop.f32.mrb[0].mxu0
    %384 = vdwg.mxu0
    %v385 = vlaneseq
    %v386 = vshrl.u32 %v385, 7
    %v387 = vadd.s32 %v386, 8
    %v388 = vadd.s32 %v386, 16
    %v389 = vadd.s32 %v386, 24
    %v390 = vadd.s32 %v386, 32
    %v391 = vadd.s32 %v386, 40
    %v392 = vadd.s32 %v386, 48
    %v393 = vadd.s32 %v386, 56
    %v394 = vadd.s32 %v386, 64
    %v395 = vadd.s32 %v386, 72
    %v396 = vadd.s32 %v386, 80
    %v397 = vadd.s32 %v386, 88
    %v398 = vadd.s32 %v386, 96
    %v399 = vadd.s32 %v386, 104
    %v400 = vadd.s32 %v386, 112
    %v401 = vadd.s32 %v386, 120
    %v402 = vshra.s32 %v386, 4
    %v403 = vshra.s32 %v387, 4
    %v404 = vshra.s32 %v388, 4
    %v405 = vshra.s32 %v389, 4
    %v406 = vshra.s32 %v390, 4
    %v407 = vshra.s32 %v391, 4
    %v408 = vshra.s32 %v392, 4
    %v409 = vshra.s32 %v393, 4
    %v410 = vshra.s32 %v394, 4
    %v411 = vshra.s32 %v395, 4
    %v412 = vshra.s32 %v396, 4
    %v413 = vshra.s32 %v397, 4
    %v414 = vshra.s32 %v398, 4
    %v415 = vshra.s32 %v399, 4
    %v416 = vshra.s32 %v400, 4
    %v417 = vshra.s32 %v401, 4
    %v418 = vlaneseq
    %v419 = vand.u32 %v418, 127
    %v420 = vshra.s32 %v419, 2
    %vm421 = vcmp.eq.s32.totalorder %v402, %v420
    %vm422 = vcmp.eq.s32.totalorder %v403, %v420
    %vm423 = vcmp.eq.s32.totalorder %v404, %v420
    %vm424 = vcmp.eq.s32.totalorder %v405, %v420
    %vm425 = vcmp.eq.s32.totalorder %v406, %v420
    %vm426 = vcmp.eq.s32.totalorder %v407, %v420
    %vm427 = vcmp.eq.s32.totalorder %v408, %v420
    %vm428 = vcmp.eq.s32.totalorder %v409, %v420
    %vm429 = vcmp.eq.s32.totalorder %v410, %v420
    %vm430 = vcmp.eq.s32.totalorder %v411, %v420
    %vm431 = vcmp.eq.s32.totalorder %v412, %v420
    %vm432 = vcmp.eq.s32.totalorder %v413, %v420
    %vm433 = vcmp.eq.s32.totalorder %v414, %v420
    %vm434 = vcmp.eq.s32.totalorder %v415, %v420
    %vm435 = vcmp.eq.s32.totalorder %v416, %v420
    %vm436 = vcmp.eq.s32.totalorder %v417, %v420
    %v437 = vsel %vm421, %v307, 0.0
    %v438 = vsel %vm422, %v312, 0.0
    %v439 = vsel %vm423, %v317, 0.0
    %v440 = vsel %vm424, %v322, 0.0
    %v441 = vsel %vm425, %v327, 0.0
    %v442 = vsel %vm426, %v332, 0.0
    %v443 = vsel %vm427, %v337, 0.0
    %v444 = vsel %vm428, %v342, 0.0
    %v445 = vsel %vm429, %v347, 0.0
    %v446 = vsel %vm430, %v352, 0.0
    %v447 = vsel %vm431, %v357, 0.0
    %v448 = vsel %vm432, %v362, 0.0
    %v449 = vsel %vm433, %v367, 0.0
    %v450 = vsel %vm434, %v372, 0.0
    %v451 = vsel %vm435, %v377, 0.0
    %v452 = vsel %vm436, %v382, 0.0
    %v454 = vsel %vm41, %v437, 0
    %v457 = vsel %vm41, %v438, 0
    %v460 = vsel %vm41, %v439, 0
    %v463 = vsel %vm41, %v440, 0
    %v466 = vsel %vm41, %v441, 0
    %v469 = vsel %vm41, %v442, 0
    %v472 = vsel %vm41, %v443, 0
    %v475 = vsel %vm41, %v444, 0
    %v478 = vsel %vm41, %v445, 0
    %v481 = vsel %vm41, %v446, 0
    %v484 = vsel %vm41, %v447, 0
    %v487 = vsel %vm41, %v448, 0
    %v490 = vsel %vm41, %v449, 0
    %v493 = vsel %vm41, %v450, 0
    %v496 = vsel %vm41, %v451, 0
    %v499 = vsel %vm41, %v452, 0
    %501 = vmatprep.subr.mxu0 0.0
    %502 = vmatpush1.msra.mxu0 %v21
    %503 = vmatprep.subr.mxu0 0.0
    %504 = vmatpush1.msra.mxu0 %v22
    %505 = vmatprep.subr.mxu0 0.0
    %506 = vmatpush1.msra.mxu0 %v23
    %507 = vmatprep.subr.mxu0 0.0
    %508 = vmatpush1.msra.mxu0 %v24
    %509 = vmatprep.subr.mxu0 0.0
    %510 = vmatpush1.msra.mxu0 0.0
    %511 = vmatprep.subr.mxu0 0.0
    %512 = vmatpush1.msra.mxu0 0.0
    %513 = vmatprep.subr.mxu0 0.0
    %514 = vmatpush1.msra.mxu0 0.0
    %515 = vmatprep.subr.mxu0 0.0
    %516 = vmatpush1.msra.mxu0 0.0
    %517 = vmatprep.subr.mxu0 0.0
    %518 = vmatpush1.msra.mxu0 0.0
    %519 = vmatprep.subr.mxu0 0.0
    %520 = vmatpush1.msra.mxu0 0.0
    %521 = vmatprep.subr.mxu0 0.0
    %522 = vmatpush1.msra.mxu0 0.0
    %523 = vmatprep.subr.mxu0 0.0
    %524 = vmatpush1.msra.mxu0 0.0
    %525 = vmatprep.subr.mxu0 0.0
    %526 = vmatpush1.msra.mxu0 0.0
    %527 = vmatprep.subr.mxu0 0.0
    %528 = vmatpush1.msra.mxu0 0.0
    %529 = vmatprep.subr.mxu0 0.0
    %530 = vmatpush1.msra.mxu0 0.0
    %531 = vmatprep.subr.mxu0 0.0
    %532 = vmatpush1.msra.mxu0 0.0
    %533 = vmatprep.subr.mxu0 0.0
    %534 = vmatpush1.msra.mxu0 0.0
    %535 = vmatprep.subr.mxu0 0.0
    %536 = vmatpush1.msra.mxu0 0.0
    %537 = vmatprep.subr.mxu0 0.0
    %538 = vmatpush1.msra.mxu0 0.0
    %539 = vmatprep.subr.mxu0 0.0
    %540 = vmatpush1.msra.mxu0 0.0
    %541 = vmatprep.subr.mxu0 0.0
    %542 = vmatpush1.msra.mxu0 0.0
    %543 = vmatprep.subr.mxu0 0.0
    %544 = vmatpush1.msra.mxu0 0.0
    %545 = vmatprep.subr.mxu0 0.0
    %546 = vmatpush1.msra.mxu0 0.0
    %547 = vmatprep.subr.mxu0 0.0
    %548 = vmatpush1.msra.mxu0 0.0
    %549 = vmatprep.subr.mxu0 0.0
    %550 = vmatpush1.msra.mxu0 0.0
    %551 = vmatprep.subr.mxu0 0.0
    %552 = vmatpush1.msra.mxu0 0.0
    %553 = vmatprep.subr.mxu0 0.0
    %554 = vmatpush1.msra.mxu0 0.0
    %555 = vmatprep.subr.mxu0 0.0
    %556 = vmatpush1.msra.mxu0 0.0
    %557 = vmatprep.subr.mxu0 0.0
    %558 = vmatpush1.msra.mxu0 0.0
    %559 = vmatprep.subr.mxu0 0.0
    %560 = vmatpush1.msra.mxu0 0.0
    %561 = vmatprep.subr.mxu0 0.0
    %562 = vmatpush1.msra.mxu0 0.0
    %563 = vmatprep.subr.mxu0 0.0
    %564 = vmatpush1.msra.mxu0 0.0
    %565 = vmatprep.mubr.f32.mxu0 0.0
    %566 = vmatmul.mubr.f32.gmra.mrb[0].mxu0 %v454
    %v567 = vpop.f32.mrb[0].mxu0
    %v568 = vadd.f32 0.0, %v567
    %v569 = vpop.f32.mrb[0].mxu0
    %570 = vmatprep.mubr.f32.mxu0 0.0
    %571 = vmatmul.mubr.f32.gmra.mrb[0].mxu0 %v457
    %v572 = vpop.f32.mrb[0].mxu0
    %v573 = vadd.f32 0.0, %v572
    %v574 = vpop.f32.mrb[0].mxu0
    %575 = vmatprep.mubr.f32.mxu0 0.0
    %576 = vmatmul.mubr.f32.gmra.mrb[0].mxu0 %v460
    %v577 = vpop.f32.mrb[0].mxu0
    %v578 = vadd.f32 0.0, %v577
    %v579 = vpop.f32.mrb[0].mxu0
    %580 = vmatprep.mubr.f32.mxu0 0.0
    %581 = vmatmul.mubr.f32.gmra.mrb[0].mxu0 %v463
    %v582 = vpop.f32.mrb[0].mxu0
    %v583 = vadd.f32 0.0, %v582
    %v584 = vpop.f32.mrb[0].mxu0
    %585 = vmatprep.mubr.f32.mxu0 0.0
    %586 = vmatmul.mubr.f32.gmra.mrb[0].mxu0 %v466
    %v587 = vpop.f32.mrb[0].mxu0
    %v588 = vadd.f32 0.0, %v587
    %v589 = vpop.f32.mrb[0].mxu0
    %590 = vmatprep.mubr.f32.mxu0 0.0
    %591 = vmatmul.mubr.f32.gmra.mrb[0].mxu0 %v469
    %v592 = vpop.f32.mrb[0].mxu0
    %v593 = vadd.f32 0.0, %v592
    %v594 = vpop.f32.mrb[0].mxu0
    %595 = vmatprep.mubr.f32.mxu0 0.0
    %596 = vmatmul.mubr.f32.gmra.mrb[0].mxu0 %v472
    %v597 = vpop.f32.mrb[0].mxu0
    %v598 = vadd.f32 0.0, %v597
    %v599 = vpop.f32.mrb[0].mxu0
    %600 = vmatprep.mubr.f32.mxu0 0.0
    %601 = vmatmul.mubr.f32.gmra.mrb[0].mxu0 %v475
    %v602 = vpop.f32.mrb[0].mxu0
    %v603 = vadd.f32 0.0, %v602
    %v604 = vpop.f32.mrb[0].mxu0
    %605 = vmatprep.mubr.f32.mxu0 0.0
    %606 = vmatmul.mubr.f32.gmra.mrb[0].mxu0 %v478
    %v607 = vpop.f32.mrb[0].mxu0
    %v608 = vadd.f32 0.0, %v607
    %v609 = vpop.f32.mrb[0].mxu0
    %610 = vmatprep.mubr.f32.mxu0 0.0
    %611 = vmatmul.mubr.f32.gmra.mrb[0].mxu0 %v481
    %v612 = vpop.f32.mrb[0].mxu0
    %v613 = vadd.f32 0.0, %v612
    %v614 = vpop.f32.mrb[0].mxu0
    %615 = vmatprep.mubr.f32.mxu0 0.0
    %616 = vmatmul.mubr.f32.gmra.mrb[0].mxu0 %v484
    %v617 = vpop.f32.mrb[0].mxu0
    %v618 = vadd.f32 0.0, %v617
    %v619 = vpop.f32.mrb[0].mxu0
    %620 = vmatprep.mubr.f32.mxu0 0.0
    %621 = vmatmul.mubr.f32.gmra.mrb[0].mxu0 %v487
    %v622 = vpop.f32.mrb[0].mxu0
    %v623 = vadd.f32 0.0, %v622
    %v624 = vpop.f32.mrb[0].mxu0
    %625 = vmatprep.mubr.f32.mxu0 0.0
    %626 = vmatmul.mubr.f32.gmra.mrb[0].mxu0 %v490
    %v627 = vpop.f32.mrb[0].mxu0
    %v628 = vadd.f32 0.0, %v627
    %v629 = vpop.f32.mrb[0].mxu0
    %630 = vmatprep.mubr.f32.mxu0 0.0
    %631 = vmatmul.mubr.f32.gmra.mrb[0].mxu0 %v493
    %v632 = vpop.f32.mrb[0].mxu0
    %v633 = vadd.f32 0.0, %v632
    %v634 = vpop.f32.mrb[0].mxu0
    %635 = vmatprep.mubr.f32.mxu0 0.0
    %636 = vmatmul.mubr.f32.gmra.mrb[0].mxu0 %v496
    %v637 = vpop.f32.mrb[0].mxu0
    %v638 = vadd.f32 0.0, %v637
    %v639 = vpop.f32.mrb[0].mxu0
    %640 = vmatprep.mubr.f32.mxu0 0.0
    %641 = vmatmul.mubr.f32.gmra.mrb[0].mxu0 %v499
    %v642 = vpop.f32.mrb[0].mxu0
    %v643 = vadd.f32 0.0, %v642
    %v644 = vpop.f32.mrb[0].mxu0
    %645 = vdwg.mxu0
    %v646 = vadd.f32 %v568, %v578
    %v647 = vadd.f32 %v573, %v583
    %v648 = vadd.f32 %v588, %v598
    %v649 = vadd.f32 %v593, %v603
    %v650 = vadd.f32 %v608, %v618
    %v651 = vadd.f32 %v613, %v623
    %v652 = vadd.f32 %v628, %v638
    %v653 = vadd.f32 %v633, %v643
    %v654 = vadd.f32 %v646, %v648
    %v655 = vadd.f32 %v647, %v649
    %v656 = vadd.f32 %v650, %v652
    %v657 = vadd.f32 %v651, %v653
    %v658 = vadd.f32 %v654, %v656
    %v659 = vadd.f32 %v655, %v657
    %v660 = vadd.f32 %v658, %v29
    %v661 = vadd.f32 %v659, %v30
    %v662 = vadd.f32 %v15, %v660
    %v663 = vadd.f32 %v16, %v661
    %v664 = vsel %vm41, %v662, 0.0
    %665 = vadd.xlane.f32.xlu0 %v664
    %v666 = vpop.xlane.xlu0 %665
    %v667 = vsel %vm41, %v663, 0.0
    %668 = vadd.xlane.f32.xlu0 %v667
    %v669 = vpop.xlane.xlu0 %668
    %v670 = vrcp.pop 32.0
    %v671 = vmul.f32 %v666, %v670
    %v672 = vmul.f32 %v669, %v670
    %v673 = vsub.f32 %v662, %v671
    %v674 = vsub.f32 %v663, %v672
    %v675 = vmul.f32 %v673, %v673
    %v676 = vmul.f32 %v674, %v674
    %v677 = vsel %vm41, %v675, 0.0
    %678 = vadd.xlane.f32.xlu0 %v677
    %v679 = vpop.xlane.xlu0 %678
    %v680 = vsel %vm41, %v676, 0.0
    %681 = vadd.xlane.f32.xlu0 %v680
    %v682 = vpop.xlane.xlu0 %681
    %v683 = vmul.f32 %v679, %v670
    %v684 = vmul.f32 %v682, %v670
    %v685 = vadd.f32 %v683, 1e-05
    %v686 = vadd.f32 %v684, 1e-05
    %v687 = vrsqrt.pop %v685
    %v688 = vrsqrt.pop %v686
    %v689 = vmul.f32 %v673, %v687
    %v690 = vmul.f32 %v674, %v688
    %v691 = vlaneseq
    %v692 = vshrl.u32 %v691, 7
    %v693 = vsub.s32 0, %v692
    %v694 = vrot.slane %v33, %v693
    %v695 = vmul.f32 %v689, %v694
    %v696 = vmul.f32 %v690, %v694
    %v697 = vlaneseq
    %v698 = vshrl.u32 %v697, 7
    %v699 = vsub.s32 0, %v698
    %v700 = vrot.slane %v34, %v699
    %v701 = vadd.f32 %v695, %v700
    %v702 = vadd.f32 %v696, %v700
    %v703 = vlaneseq
    %v704 = vshrl.u32 %v703, 7
    %v705 = vsub.s32 0, %v704
    %v706 = vrot.slane %v32, %v705
    %v708 = vsel %vm41, %v701, 0
    %v711 = vsel %vm41, %v702, 0
    %713 = vmatprep.subr.mxu0 0.0
    %714 = vmatpush1.msra.mxu0 %v25
    %715 = vmatprep.subr.mxu0 0.0
    %716 = vmatpush1.msra.mxu0 %v26
    %717 = vmatprep.subr.mxu0 0.0
    %718 = vmatpush1.msra.mxu0 %v27
    %719 = vmatprep.subr.mxu0 0.0
    %720 = vmatpush1.msra.mxu0 %v28
    %721 = vmatprep.subr.mxu0 0.0
    %722 = vmatpush1.msra.mxu0 0.0
    %723 = vmatprep.subr.mxu0 0.0
    %724 = vmatpush1.msra.mxu0 0.0
    %725 = vmatprep.subr.mxu0 0.0
    %726 = vmatpush1.msra.mxu0 0.0
    %727 = vmatprep.subr.mxu0 0.0
    %728 = vmatpush1.msra.mxu0 0.0
    %729 = vmatprep.subr.mxu0 0.0
    %730 = vmatpush1.msra.mxu0 0.0
    %731 = vmatprep.subr.mxu0 0.0
    %732 = vmatpush1.msra.mxu0 0.0
    %733 = vmatprep.subr.mxu0 0.0
    %734 = vmatpush1.msra.mxu0 0.0
    %735 = vmatprep.subr.mxu0 0.0
    %736 = vmatpush1.msra.mxu0 0.0
    %737 = vmatprep.subr.mxu0 0.0
    %738 = vmatpush1.msra.mxu0 0.0
    %739 = vmatprep.subr.mxu0 0.0
    %740 = vmatpush1.msra.mxu0 0.0
    %741 = vmatprep.subr.mxu0 0.0
    %742 = vmatpush1.msra.mxu0 0.0
    %743 = vmatprep.subr.mxu0 0.0
    %744 = vmatpush1.msra.mxu0 0.0
    %745 = vmatprep.subr.mxu0 0.0
    %746 = vmatpush1.msra.mxu0 0.0
    %747 = vmatprep.subr.mxu0 0.0
    %748 = vmatpush1.msra.mxu0 0.0
    %749 = vmatprep.subr.mxu0 0.0
    %750 = vmatpush1.msra.mxu0 0.0
    %751 = vmatprep.subr.mxu0 0.0
    %752 = vmatpush1.msra.mxu0 0.0
    %753 = vmatprep.subr.mxu0 0.0
    %754 = vmatpush1.msra.mxu0 0.0
    %755 = vmatprep.subr.mxu0 0.0
    %756 = vmatpush1.msra.mxu0 0.0
    %757 = vmatprep.subr.mxu0 0.0
    %758 = vmatpush1.msra.mxu0 0.0
    %759 = vmatprep.subr.mxu0 0.0
    %760 = vmatpush1.msra.mxu0 0.0
    %761 = vmatprep.subr.mxu0 0.0
    %762 = vmatpush1.msra.mxu0 0.0
    %763 = vmatprep.subr.mxu0 0.0
    %764 = vmatpush1.msra.mxu0 0.0
    %765 = vmatprep.subr.mxu0 0.0
    %766 = vmatpush1.msra.mxu0 0.0
    %767 = vmatprep.subr.mxu0 0.0
    %768 = vmatpush1.msra.mxu0 0.0
    %769 = vmatprep.subr.mxu0 0.0
    %770 = vmatpush1.msra.mxu0 0.0
    %771 = vmatprep.subr.mxu0 0.0
    %772 = vmatpush1.msra.mxu0 0.0
    %773 = vmatprep.subr.mxu0 0.0
    %774 = vmatpush1.msra.mxu0 0.0
    %775 = vmatprep.subr.mxu0 0.0
    %776 = vmatpush1.msra.mxu0 0.0
    %777 = vmatprep.mubr.f32.mxu0 0.0
    %778 = vmatmul.mubr.f32.gmra.mrb[0].mxu0 %v708
    %v779 = vpop.f32.mrb[0].mxu0
    %v780 = vadd.f32 %v706, %v779
    %v781 = vpop.f32.mrb[0].mxu0
    %782 = vmatprep.mubr.f32.mxu0 0.0
    %783 = vmatmul.mubr.f32.gmra.mrb[0].mxu0 %v711
    %v784 = vpop.f32.mrb[0].mxu0
    %v785 = vadd.f32 %v706, %v784
    %v786 = vpop.f32.mrb[0].mxu0
    %787 = vdwg.mxu0
    %v788 = vsel %vm41, %v780, 0.0
    %789 = vadd.xlane.f32.xlu0 %v788
    %v790 = vpop.xlane.xlu0 %789
    %v791 = vsel %vm41, %v785, 0.0
    %792 = vadd.xlane.f32.xlu0 %v791
    %v793 = vpop.xlane.xlu0 %792
    %v794 = vmul.f32 %v790, %v670
    %v795 = vmul.f32 %v793, %v670
    %v796 = vsub.f32 %v780, %v794
    %v797 = vsub.f32 %v785, %v795
    %v798 = vmul.f32 %v796, %v796
    %v799 = vmul.f32 %v797, %v797
    %v800 = vsel %vm41, %v798, 0.0
    %801 = vadd.xlane.f32.xlu0 %v800
    %v802 = vpop.xlane.xlu0 %801
    %v803 = vsel %vm41, %v799, 0.0
    %804 = vadd.xlane.f32.xlu0 %v803
    %v805 = vpop.xlane.xlu0 %804
    %v806 = vmul.f32 %v802, %v670
    %v807 = vmul.f32 %v805, %v670
    %v808 = vadd.f32 %v806, 1e-05
    %v809 = vadd.f32 %v807, 1e-05
    %v810 = vrsqrt.pop %v808
    %v811 = vrsqrt.pop %v809
    %v812 = vmul.f32 %v796, %v810
    %v813 = vmul.f32 %v797, %v811
    %v814 = vlaneseq
    %v815 = vshrl.u32 %v814, 7
    %v816 = vsub.s32 0, %v815
    %v817 = vrot.slane %v35, %v816
    %v818 = vmul.f32 %v812, %v817
    %v819 = vmul.f32 %v813, %v817
    %v820 = vlaneseq
    %v821 = vshrl.u32 %v820, 7
    %v822 = vsub.s32 0, %v821
    %v823 = vrot.slane %v36, %v822
    %v824 = vadd.f32 %v818, %v823
    %v825 = vadd.f32 %v819, %v823
    %v826 = vmul.f32 %v824, 0.5
    %v827 = vmul.f32 %v825, 0.5
    %v828 = vmul.f32 %v824, 0.70710677
    %v829 = vmul.f32 %v825, 0.70710677
    %vm830 = vcmp.ge.f32.partialorder %v828, 0.0
    %vm831 = vcmp.ge.f32.partialorder %v829, 0.0
    %v832 = vsel %vm830, 1.0, -1.0
    %v833 = vsel %vm831, 1.0, -1.0
    %v834 = vand.u32 2147483647, %v828
    %v835 = vand.u32 2147483647, %v829
    %v836 = vmul.f32 %v834, 0.3275911
    %v837 = vmul.f32 %v835, 0.3275911
    %v838 = vadd.f32 %v836, 1.0
    %v839 = vadd.f32 %v837, 1.0
    %v840 = vrcp.pop %v838
    %v841 = vrcp.pop %v839
    %v842 = vmul.f32 %v840, 1.0614054
    %v843 = vmul.f32 %v841, 1.0614054
    %v844 = vadd.f32 %v842, -1.4531521
    %v845 = vadd.f32 %v843, -1.4531521
    %v846 = vmul.f32 %v844, %v840
    %v847 = vmul.f32 %v845, %v841
    %v848 = vadd.f32 %v846, 1.4214138
    %v849 = vadd.f32 %v847, 1.4214138
    %v850 = vmul.f32 %v848, %v840
    %v851 = vmul.f32 %v849, %v841
    %v852 = vadd.f32 %v850, -0.28449672
    %v853 = vadd.f32 %v851, -0.28449672
    %v854 = vmul.f32 %v852, %v840
    %v855 = vmul.f32 %v853, %v841
    %v856 = vadd.f32 %v854, 0.2548296
    %v857 = vadd.f32 %v855, 0.2548296
    %v858 = vmul.f32 %v856, %v840
    %v859 = vmul.f32 %v857, %v841
    %v860 = vsub.f32 0.0, %v834
    %v861 = vsub.f32 0.0, %v835
    %v862 = vmul.f32 %v860, %v834
    %v863 = vmul.f32 %v861, %v835
    %v864 = vmul.f32 %v862, 1.442695
    %v865 = vpow.pop %v864
    %v866 = vmul.f32 %v863, 1.442695
    %v867 = vpow.pop %v866
    %v868 = vmul.f32 %v858, %v865
    %v869 = vmul.f32 %v859, %v867
    %v870 = vsub.f32 1.0, %v868
    %v871 = vsub.f32 1.0, %v869
    %v872 = vmul.f32 %v832, %v870
    %v873 = vmul.f32 %v833, %v871
    %v874 = vadd.f32 %v872, 1.0
    %v875 = vadd.f32 %v873, 1.0
    %v876 = vmul.f32 %v826, %v874
    %v877 = vmul.f32 %v827, %v875
    %v878 = vadd.f32 %v876, %v15
    %v879 = vadd.f32 %v877, %v16
    %880 = vst.msk [vmem:[#allocation2] sm:$0xff] %vm41, %v878
    %881 = vst.msk [vmem:[#allocation2 + $0x8] sm:$0xff] %vm41, %v879
    // Predicated region
    $region14: #{tpu_custom_call.1} parent=1 // pred_check
      _
    $region15: #{tpu_custom_call.1} parent=1 // pred_check_branch
      %883 = sbr.rel (0) target = $region17
    $region16: #{tpu_custom_call.1} parent=1 // pred_region
      %s885 = ssub.s32 256, 256
      %886 = vsyncadd [#allocation3], %s885
      %s887 = sshll.u32 [#allocation2], 4
      %s888 = int_to_ptr.vmem [resolvable:$true] %s887
      %893 = dma.vmem_to_hbm [thread:$0]  %s888, 256, %s3, [#allocation3], 128, 128, 8
    $region17: #{tpu_custom_call.1} parent=1 // pred_fallthru
      _
    // Predicated region
    $region18: #{tpu_custom_call.1} parent=1 // pred_check
      _
    $region19: #{tpu_custom_call.1} parent=1 // pred_check_branch
      %895 = sbr.rel (0) target = $region21
    $region20: #{tpu_custom_call.1} parent=1 // pred_region
      %896 = dma.done [#allocation3], 256
    $region21: #{tpu_custom_call.1} parent=1 // pred_fallthru
      _
    %897 = vsyncpa [#allocation3], 1

</llo_original>
